<compile_context>
chip_gen: v5e
topology: v5e:2x2
jax: 0.10.0
libtpu: 0.0.40
codegen_flags: <defaults>
</compile_context>

<pallas_src>
import jax
import jax.numpy as jnp
from jax.experimental import pallas as pl
from jax.experimental.pallas import tpu as pltpu

EPS = 1e-6
LANE = 128
_PAD_LOGIT = -100.0   # 0.5*tanh(0.5*-100)+0.5 == 0.0 exactly -> padding is neutral


def _round_up(a, b):
    return -(-a // b) * b


def _largest_divisor_leq(n, cap):
    cap = max(1, min(n, cap))
    for d in range(cap, 0, -1):
        if n % d == 0:
            return d
    return 1


def _tpu_defaults():
    """(block_bytes, vmem_limit_bytes, num_tensorcores) sized for this chip."""
    vmem_cap = 64 * 1024 * 1024          # conservative (v7x per-TC) fallback
    num_tc = 1
    try:
        info = pltpu.get_tpu_info()
        vmem_cap = int(info.vmem_capacity_bytes)
        num_tc = 2 if vmem_cap <= 96 * 1024 * 1024 else 1   # v7x: 64 MiB/TC, 2 TCs
    except Exception:
        pass
    vmem_limit = (vmem_cap * 3) // 4                        # 48 MiB v7x / 96 MiB v5e,v6e
    block_bytes = min(8 * 1024 * 1024, vmem_limit // 6)     # per-input-tile target
    return block_bytes, vmem_limit, num_tc


def _make_dice_kernel(ts, slab, tiles_per_shard, s_arr, needs_mask):
    nslabs = ts // slab

    def kernel(x_ref, t_ref, oi_ref, od_ref, acc_i_ref, acc_d_ref):
        i = pl.program_id(2)

        @pl.when(i == 0)
        def _init():
            acc_i_ref[...] = jnp.zeros_like(acc_i_ref)
            acc_d_ref[...] = jnp.zeros_like(acc_d_ref)

        tile_row0 = (pl.program_id(1) * tiles_per_shard + i) * ts

        def slab_body(k, carry):
            off = pl.multiple_of(k * slab, slab)
            x = x_ref[:, pl.ds(off, slab), :].astype(jnp.float32)
            t = t_ref[:, pl.ds(off, slab), :].astype(jnp.float32)
            # sigmoid(x) = 0.5*tanh(0.5*x) + 0.5 : one EUP issue per element.
            p = 0.5 * jnp.tanh(0.5 * x) + 0.5
            pi = p * t
            pd = p * p + t * t
            if needs_mask:
                rows = tile_row0 + off + jax.lax.broadcasted_iota(
                    jnp.int32, (1, slab, 1), 1)
                valid = rows < s_arr
                pi = jnp.where(valid, pi, 0.0)
                pd = jnp.where(valid, pd, 0.0)
            acc_i_ref[...] += pi
            acc_d_ref[...] += pd
            return carry

        jax.lax.fori_loop(0, nslabs, slab_body, 0, unroll=min(8, nslabs))

        @pl.when(i == pl.num_programs(2) - 1)
        def _finalize():
            # One sublane (XLU) reduce per (r-block, shard); outputs stay lane-dense.
            oi_ref[0, 0] = jnp.sum(acc_i_ref[...], axis=1)
            od_ref[0, 0] = jnp.sum(acc_d_ref[...], axis=1)

    return kernel


def abstract_dice_loss(inputs, targets, *, block_bytes=None,
                       vmem_limit_bytes=None, num_shards=None):
    """inputs/targets: (N, C, H, W) arrays (NCHW, matching PyTorch)."""
    n, c, h, w = inputs.shape
    assert targets.shape == inputs.shape
    r = n * c
    m = h * w

    bb_def, vl_def, tc_def = _tpu_defaults()
    block_bytes = bb_def if block_bytes is None else block_bytes
    vmem_limit_bytes = vl_def if vmem_limit_bytes is None else vmem_limit_bytes
    num_shards = tc_def if num_shards is None else num_shards

    # Contiguous (free) flatten: (N, C, H, W) -> (N*C, H*W).  No transpose.
    x = inputs.reshape(r, m)
    t = targets.reshape(r, m)

    itemsize = max(inputs.dtype.itemsize, targets.dtype.itemsize)
    min_itemsize = min(inputs.dtype.itemsize, targets.dtype.itemsize)
    slab = max(8, 32 // min_itemsize)        # 8 f32 / 16 bf16 / 32 int8,fp8 sublanes

    s_valid = -(-m // LANE)                  # sublane rows that contain real data
    if m % LANE != 0 or s_valid < slab:
        # TODO(synk): unaligned or tiny spatial extent -> one padding copy in HBM.
        #             Lane-aligned shapes (the common case) never take this branch.
        s_arr = max(_round_up(s_valid, slab), slab)
        pad = s_arr * LANE - m
        x = jnp.pad(x, ((0, 0), (0, pad)), constant_values=_PAD_LOGIT)
        t = jnp.pad(t, ((0, 0), (0, pad)), constant_values=0.0)
    else:
        s_arr = s_valid                      # no HBM copy; tail handled by masking

    x3 = x.reshape(r, s_arr, LANE)
    t3 = t.reshape(r, s_arr, LANE)

    # R = N*C tiling keeps VMEM bounded for any batch/channel count.
    rb_cap = max(1, block_bytes // (slab * LANE * itemsize))
    rb = _largest_divisor_leq(r, min(rb_cap, 1024))
    nrb = r // rb

    # Spatial tile: ts sublane rows of 128 lanes, multiple of the packed slab.
    ts = (block_bytes // (rb * LANE * itemsize)) // slab * slab
    ts = max(slab, min(ts, 2048))
    ts = min(ts, (s_arr // slab) * slab)

    total_tiles = -(-s_arr // ts)
    shards = 1
    if (nrb == 1 and num_shards > 1 and total_tiles % num_shards == 0
            and total_tiles >= 2 * num_shards):
        shards = num_shards                  # megacore split (v7x) of the reduction
    tiles_per_shard = total_tiles // shards
    needs_mask = (s_arr % ts) != 0           # partial last tile -> mask in kernel

    kernel = _make_dice_kernel(ts, slab, tiles_per_shard, s_arr, needs_mask)

    in_map = lambda rb_i, sh, i: (rb_i, sh * tiles_per_shard + i, 0)
    out_map = lambda rb_i, sh, i: (sh, rb_i, 0, 0)

    parts_i, parts_d = pl.pallas_call(
        kernel,
        out_shape=(
            jax.ShapeDtypeStruct((shards, nrb, rb, LANE), jnp.float32),
            jax.ShapeDtypeStruct((shards, nrb, rb, LANE), jnp.float32),
        ),
        grid_spec=pltpu.PrefetchScalarGridSpec(
            num_scalar_prefetch=0,
            grid=(nrb, shards, tiles_per_shard),
            in_specs=[
                pl.BlockSpec((rb, ts, LANE), in_map),
                pl.BlockSpec((rb, ts, LANE), in_map),
            ],
            out_specs=[
                pl.BlockSpec((1, 1, rb, LANE), out_map),
                pl.BlockSpec((1, 1, rb, LANE), out_map),
            ],
            scratch_shapes=[
                pltpu.VMEM((rb, slab, LANE), jnp.float32),
                pltpu.VMEM((rb, slab, LANE), jnp.float32),
            ],
        ),
        compiler_params=pltpu.CompilerParams(
            dimension_semantics=("parallel", "parallel", "arbitrary"),
            vmem_limit_bytes=int(vmem_limit_bytes),
        ),
    )(x3, t3)

    # Tiny XLA epilogue: fold shards + lanes, then (N, C) rows -> per-channel Dice.
    inter = parts_i.sum(axis=(0, 3)).reshape(n, c).sum(axis=0)   # (C,)
    den = parts_d.sum(axis=(0, 3)).reshape(n, c).sum(axis=0)     # (C,)
    per_channel_dice = 2.0 * inter / jnp.maximum(den, EPS)
    return 1.0 - jnp.mean(per_channel_dice)


def _reference(inputs, targets):
    p = jax.nn.sigmoid(inputs.astype(jnp.float32))
    t = targets.astype(jnp.float32)
    c = inputs.shape[1]
    pf = jnp.transpose(p, (1, 0, 2, 3)).reshape(c, -1)
    tf = jnp.transpose(t, (1, 0, 2, 3)).reshape(c, -1)
    intersect = jnp.sum(pf * tf, axis=-1)
    denom = jnp.maximum(jnp.sum(pf * pf + tf * tf, axis=-1), EPS)
    return 1.0 - jnp.mean(2.0 * intersect / denom)


if __name__ == "__main__":
    key = jax.random.PRNGKey(0)
    k1, k2 = jax.random.split(key)
    N, C, H, W = 2, 4, 16, 16
    x = jax.random.normal(k1, (N, C, H, W), dtype=jnp.float32)        # logits
    tgt = (jax.random.uniform(k2, (N, C, H, W)) > 0.5).astype(jnp.float32)

    loss = jax.block_until_ready(abstract_dice_loss(x, tgt))
    ref = jax.block_until_ready(_reference(x, tgt))

    assert jnp.allclose(loss, ref, atol=1e-5, rtol=1e-5), (loss, ref)
    print("KERNEL_OK")
</pallas_src>

<mosaic_0001>
module attributes {stable_mosaic.version = 11 : i64} {
  func.func @kernel(%arg0: i32, %arg1: i32, %arg2: i32, %arg3: memref<8x8x128xf32, #tpu.memory_space<vmem>>, %arg4: memref<8x8x128xf32, #tpu.memory_space<vmem>>, %arg5: memref<1x1x8x128xf32, #tpu.memory_space<vmem>>, %arg6: memref<1x1x8x128xf32, #tpu.memory_space<vmem>>, %arg7: memref<8x8x128xf32, #tpu.memory_space<vmem>>, %arg8: memref<8x8x128xf32, #tpu.memory_space<vmem>>) attributes {dimension_semantics = [#tpu.dimension_semantics<parallel>, #tpu.dimension_semantics<parallel>, #tpu.dimension_semantics<arbitrary>], iteration_bounds = array<i64: 1, 1, 1>, scalar_prefetch = 0 : i64, scratch_operands = 2 : i64, tpu.core_type = #tpu.core_type<tc>, window_params = [{transform_indices = @transform_0, window_bounds = array<i64: 8, 8, 128>}, {transform_indices = @transform_1, window_bounds = array<i64: 8, 8, 128>}, {transform_indices = @transform_2, window_bounds = array<i64: 1, 1, 8, 128>}, {transform_indices = @transform_3, window_bounds = array<i64: 1, 1, 8, 128>}]} {
    %c0_i32 = arith.constant 0 : i32
    %0 = arith.cmpi eq, %arg2, %c0_i32 : i32
    %1 = arith.extui %0 : i1 to i32
    %c0_i32_0 = arith.constant 0 : i32
    %2 = arith.cmpi ne, %1, %c0_i32_0 : i32
    scf.if %2 {
      %cst_21 = arith.constant 0.000000e+00 : f32
      %29 = vector.broadcast %cst_21 : f32 to vector<8x8x128xf32>
      %c0_22 = arith.constant 0 : index
      %c0_23 = arith.constant 0 : index
      %c0_24 = arith.constant 0 : index
      %30 = vector.load %arg7[%c0_22, %c0_23, %c0_24] : memref<8x8x128xf32, #tpu.memory_space<vmem>>, vector<8x8x128xf32>
      tpu.vector_store %arg7[%c0_22, %c0_23, %c0_24], %29 {strides = array<i32>} : memref<8x8x128xf32, #tpu.memory_space<vmem>>, vector<8x8x128xf32>,
      %cst_25 = arith.constant 0.000000e+00 : f32
      %31 = vector.broadcast %cst_25 : f32 to vector<8x8x128xf32>
      %c0_26 = arith.constant 0 : index
      %c0_27 = arith.constant 0 : index
      %c0_28 = arith.constant 0 : index
      %32 = vector.load %arg8[%c0_26, %c0_27, %c0_28] : memref<8x8x128xf32, #tpu.memory_space<vmem>>, vector<8x8x128xf32>
      tpu.vector_store %arg8[%c0_26, %c0_27, %c0_28], %31 {strides = array<i32>} : memref<8x8x128xf32, #tpu.memory_space<vmem>>, vector<8x8x128xf32>,
    } else {
    }
    %c0_i32_1 = arith.constant 0 : i32
    %c8_i32 = arith.constant 8 : i32
    %3 = arith.muli %c0_i32_1, %c8_i32 : i32
    %4 = tpu.assume_multiple %3, 8 : i32
    %c0 = arith.constant 0 : index
    %5 = arith.index_cast %4 : i32 to index
    %c0_2 = arith.constant 0 : index
    %6 = vector.load %arg3[%c0, %5, %c0_2] : memref<8x8x128xf32, #tpu.memory_space<vmem>>, vector<8x8x128xf32>
    %c0_3 = arith.constant 0 : index
    %7 = arith.index_cast %4 : i32 to index
    %c0_4 = arith.constant 0 : index
    %8 = vector.load %arg4[%c0_3, %7, %c0_4] : memref<8x8x128xf32, #tpu.memory_space<vmem>>, vector<8x8x128xf32>
    %cst = arith.constant 5.000000e-01 : f32
    %9 = vector.broadcast %cst : f32 to vector<8x8x128xf32>
    %10 = arith.mulf %9, %6 : vector<8x8x128xf32>
    %11 = math.tanh %10 : vector<8x8x128xf32>
    %cst_5 = arith.constant 5.000000e-01 : f32
    %12 = vector.broadcast %cst_5 : f32 to vector<8x8x128xf32>
    %13 = arith.mulf %12, %11 : vector<8x8x128xf32>
    %cst_6 = arith.constant 5.000000e-01 : f32
    %14 = vector.broadcast %cst_6 : f32 to vector<8x8x128xf32>
    %15 = arith.addf %13, %14 : vector<8x8x128xf32>
    %16 = arith.mulf %15, %8 : vector<8x8x128xf32>
    %17 = arith.mulf %15, %15 : vector<8x8x128xf32>
    %18 = arith.mulf %8, %8 : vector<8x8x128xf32>
    %19 = arith.addf %17, %18 : vector<8x8x128xf32>
    %c0_7 = arith.constant 0 : index
    %c0_8 = arith.constant 0 : index
    %c0_9 = arith.constant 0 : index
    %20 = vector.load %arg7[%c0_7, %c0_8, %c0_9] : memref<8x8x128xf32, #tpu.memory_space<vmem>>, vector<8x8x128xf32>
    %21 = arith.addf %20, %16 : vector<8x8x128xf32>
    %c0_10 = arith.constant 0 : index
    %c0_11 = arith.constant 0 : index
    %c0_12 = arith.constant 0 : index
    %22 = vector.load %arg7[%c0_10, %c0_11, %c0_12] : memref<8x8x128xf32, #tpu.memory_space<vmem>>, vector<8x8x128xf32>
    tpu.vector_store %arg7[%c0_10, %c0_11, %c0_12], %21 {strides = array<i32>} : memref<8x8x128xf32, #tpu.memory_space<vmem>>, vector<8x8x128xf32>,
    %c0_13 = arith.constant 0 : index
    %c0_14 = arith.constant 0 : index
    %c0_15 = arith.constant 0 : index
    %23 = vector.load %arg8[%c0_13, %c0_14, %c0_15] : memref<8x8x128xf32, #tpu.memory_space<vmem>>, vector<8x8x128xf32>
    %24 = arith.addf %23, %19 : vector<8x8x128xf32>
    %c0_16 = arith.constant 0 : index
    %c0_17 = arith.constant 0 : index
    %c0_18 = arith.constant 0 : index
    %25 = vector.load %arg8[%c0_16, %c0_17, %c0_18] : memref<8x8x128xf32, #tpu.memory_space<vmem>>, vector<8x8x128xf32>
    tpu.vector_store %arg8[%c0_16, %c0_17, %c0_18], %24 {strides = array<i32>} : memref<8x8x128xf32, #tpu.memory_space<vmem>>, vector<8x8x128xf32>,
    %c1_i32 = arith.constant 1 : i32
    %c0_i32_19 = arith.constant 0 : i32
    %26 = arith.cmpi eq, %arg2, %c0_i32_19 : i32
    %27 = arith.extui %26 : i1 to i32
    %c0_i32_20 = arith.constant 0 : i32
    %28 = arith.cmpi ne, %27, %c0_i32_20 : i32
    scf.if %28 {
      %c0_21 = arith.constant 0 : index
      %c0_22 = arith.constant 0 : index
      %c0_23 = arith.constant 0 : index
      %29 = vector.load %arg7[%c0_21, %c0_22, %c0_23] : memref<8x8x128xf32, #tpu.memory_space<vmem>>, vector<8x8x128xf32>
      %cst_24 = arith.constant dense<0.000000e+00> : vector<8x128xf32>
      %30 = vector.multi_reduction <add>, %29, %cst_24 [1] : vector<8x8x128xf32> to vector<8x128xf32>
      %c0_25 = arith.constant 0 : index
      %c0_26 = arith.constant 0 : index
      %c0_27 = arith.constant 0 : index
      %c0_28 = arith.constant 0 : index
      %31 = vector.load %arg5[%c0_25, %c0_26, %c0_27, %c0_28] : memref<1x1x8x128xf32, #tpu.memory_space<vmem>>, vector<1x1x8x128xf32>
      %32 = vector.shape_cast %31 : vector<1x1x8x128xf32> to vector<8x128xf32>
      %33 = vector.shape_cast %30 : vector<8x128xf32> to vector<1x1x8x128xf32>
      tpu.vector_store %arg5[%c0_25, %c0_26, %c0_27, %c0_28], %33 {strides = array<i32>} : memref<1x1x8x128xf32, #tpu.memory_space<vmem>>, vector<1x1x8x128xf32>,
      %c0_29 = arith.constant 0 : index
      %c0_30 = arith.constant 0 : index
      %c0_31 = arith.constant 0 : index
      %34 = vector.load %arg8[%c0_29, %c0_30, %c0_31] : memref<8x8x128xf32, #tpu.memory_space<vmem>>, vector<8x8x128xf32>
      %cst_32 = arith.constant dense<0.000000e+00> : vector<8x128xf32>
      %35 = vector.multi_reduction <add>, %34, %cst_32 [1] : vector<8x8x128xf32> to vector<8x128xf32>
      %c0_33 = arith.constant 0 : index
      %c0_34 = arith.constant 0 : index
      %c0_35 = arith.constant 0 : index
      %c0_36 = arith.constant 0 : index
      %36 = vector.load %arg6[%c0_33, %c0_34, %c0_35, %c0_36] : memref<1x1x8x128xf32, #tpu.memory_space<vmem>>, vector<1x1x8x128xf32>
      %37 = vector.shape_cast %36 : vector<1x1x8x128xf32> to vector<8x128xf32>
      %38 = vector.shape_cast %35 : vector<8x128xf32> to vector<1x1x8x128xf32>
      tpu.vector_store %arg6[%c0_33, %c0_34, %c0_35, %c0_36], %38 {strides = array<i32>} : memref<1x1x8x128xf32, #tpu.memory_space<vmem>>, vector<1x1x8x128xf32>,
    } else {
    }
    return
  }
  func.func @transform_0(%arg0: i32, %arg1: i32, %arg2: i32) -> (i32, i32, i32) {
    %c1_i32 = arith.constant 1 : i32
    %0 = arith.muli %arg1, %c1_i32 : i32
    %1 = arith.addi %0, %arg2 : i32
    %c0_i32 = arith.constant 0 : i32
    %c0_i32_0 = arith.constant 0 : i32
    return %arg0, %1, %c0_i32 : i32, i32, i32
  }
  func.func @transform_1(%arg0: i32, %arg1: i32, %arg2: i32) -> (i32, i32, i32) {
    %c1_i32 = arith.constant 1 : i32
    %0 = arith.muli %arg1, %c1_i32 : i32
    %1 = arith.addi %0, %arg2 : i32
    %c0_i32 = arith.constant 0 : i32
    %c0_i32_0 = arith.constant 0 : i32
    return %arg0, %1, %c0_i32 : i32, i32, i32
  }
  func.func @transform_2(%arg0: i32, %arg1: i32, %arg2: i32) -> (i32, i32, i32, i32) {
    %c0_i32 = arith.constant 0 : i32
    %c0_i32_0 = arith.constant 0 : i32
    %c0_i32_1 = arith.constant 0 : i32
    return %arg1, %arg0, %c0_i32, %c0_i32_0 : i32, i32, i32, i32
  }
  func.func @transform_3(%arg0: i32, %arg1: i32, %arg2: i32) -> (i32, i32, i32, i32) {
    %c0_i32 = arith.constant 0 : i32
    %c0_i32_0 = arith.constant 0 : i32
    %c0_i32_1 = arith.constant 0 : i32
    return %arg1, %arg0, %c0_i32, %c0_i32_0 : i32, i32, i32, i32
  }
}

</mosaic_0001>

<llo_original>
// kernel: tpu_custom_call.1
$region0: #{tpu_custom_call.1}
  #allocation0 [shape = 'u32[]', space=smem, size = 0x4, offset = 0x4, fixed_abs, tag = 'smem constant byte address 0x4 - core index']
  #allocation1 [shape = 'u32[72,128]{1,0:T(1,128)}', space=vmem, size = 0x9000, scoped, tag = 'internal scratch']
  #allocation2 [shape = 'f32[8,8,128]{2,1,0:T(8,128)}', space=vmem, size = 0x8000, scoped, tag = 'scratch operand']
  #allocation3 [shape = 'f32[8,8,128]{2,1,0:T(8,128)}', space=vmem, size = 0x8000, scoped, tag = 'scratch operand']
  %s0 = inlined_call_operand.hbm [shape: f32[8,8,128], index: 0, kind: input, shape index: {}]
  %s1 = inlined_call_operand.hbm [shape: f32[8,8,128], index: 1, kind: input, shape index: {}]
  %s2 = inlined_call_operand.hbm [shape: f32[1,1,8,128], index: 2, kind: output, shape index: {0}]
  %s3 = inlined_call_operand.hbm [shape: f32[1,1,8,128], index: 3, kind: output, shape index: {1}]
  %4 = xla_tuple %s2, %s3
  %s5 = sld [smem:[#allocation0]]
  $region42: #{tpu_custom_call.1} parent=0
    _
  %s7 = ssub.s32 1, %s5
  %s8 = scalar_select 0, %s7, %s5
  $region1: #{tpu_custom_call.1} parent=0
    #allocation4 [shape = 'u8[32768]{0}', space=vmem, size = 0x8000, scoped, tag = 'input window, operand 0, single buffered']
    #allocation5 [shape = 's32[1]{0}', space=sflag, size = 0x4, scoped, tag = 'scoped memory for tpu_custom_call.1']
    #allocation6 [shape = 's32[1]{0}', space=sflag, size = 0x4, scoped, tag = 'scoped memory for tpu_custom_call.1']
    #allocation7 [shape = 'u8[32768]{0}', space=vmem, size = 0x8000, scoped, tag = 'input window, operand 1, single buffered']
    #allocation8 [shape = 's32[1]{0}', space=sflag, size = 0x4, scoped, tag = 'scoped memory for tpu_custom_call.1']
    #allocation9 [shape = 'u8[4096]{0}', space=vmem, size = 0x1000, scoped, tag = 'output window, operand 0, single buffered']
    #allocation10 [shape = 'u8[4096]{0}', space=vmem, size = 0x1000, scoped, tag = 'output window, operand 1, single buffered']
    #allocation11 [shape = 's32[1]{0}', space=sflag, size = 0x4, scoped, tag = 'scoped memory for tpu_custom_call.1']
    %9 = vsyncpa [#allocation5], 0
    %10 = vsyncpa [#allocation8], 0
    %11 = vsyncpa [#allocation6], 0
    %12 = vsyncpa [#allocation11], 0
    // Predicated region
    $region2: #{tpu_custom_call.1} parent=1 // pred_check
      _
    $region3: #{tpu_custom_call.1} parent=1 // pred_check_branch
      %14 = sbr.rel (0) target = $region5
    $region4: #{tpu_custom_call.1} parent=1 // pred_region
      %s15 = sadd.s32 0, 0
      %17 = vsyncadd [#allocation5], 0
      %s18 = smul.addr %s15, 8
      %s19 = scalar_lea.hbm %s0, %s18
      %s20 = sshll.u32 %s19, 4
      %s21 = int_to_ptr.hbm [resolvable:$true] %s20
      %s22 = sshll.u32 [#allocation4], 4
      %s23 = int_to_ptr.vmem [resolvable:$true] %s22
      %28 = dma.hbm_to_vmem [thread:$0]  %s21, 1024, %s23, [#allocation5], 128, 128, 8
    $region5: #{tpu_custom_call.1} parent=1 // pred_fallthru
      _
    // Predicated region
    $region6: #{tpu_custom_call.1} parent=1 // pred_check
      _
    $region7: #{tpu_custom_call.1} parent=1 // pred_check_branch
      %30 = sbr.rel (0) target = $region9
    $region8: #{tpu_custom_call.1} parent=1 // pred_region
      %s31 = sadd.s32 0, 0
      %33 = vsyncadd [#allocation8], 0
      %s34 = smul.addr %s31, 8
      %s35 = scalar_lea.hbm %s1, %s34
      %s36 = sshll.u32 %s35, 4
      %s37 = int_to_ptr.hbm [resolvable:$true] %s36
      %s38 = sshll.u32 [#allocation7], 4
      %s39 = int_to_ptr.vmem [resolvable:$true] %s38
      %44 = dma.hbm_to_vmem [thread:$0]  %s37, 1024, %s39, [#allocation8], 128, 128, 8
    $region9: #{tpu_custom_call.1} parent=1 // pred_fallthru
      _
    // Predicated region
    $region10: #{tpu_custom_call.1} parent=1 // pred_check
      _
    $region11: #{tpu_custom_call.1} parent=1 // pred_check_branch
      %46 = sbr.rel (0) target = $region13
    $region12: #{tpu_custom_call.1} parent=1 // pred_region
      %48 = dma.done [#allocation5], 1024
    $region13: #{tpu_custom_call.1} parent=1 // pred_fallthru
      _
    // Predicated region
    $region14: #{tpu_custom_call.1} parent=1 // pred_check
      _
    $region15: #{tpu_custom_call.1} parent=1 // pred_check_branch
      %50 = sbr.rel (0) target = $region17
    $region16: #{tpu_custom_call.1} parent=1 // pred_region
      %52 = dma.done [#allocation8], 1024
    $region17: #{tpu_custom_call.1} parent=1 // pred_fallthru
      _
    %s53 = sadd.s32 0, 0
    %s54 = sadd.s32 0, 0
    %p55 = scmp.eq.s32.totalorder 0, 0
    // Predicated region
    $region18: #{tpu_custom_call.1} parent=1 // pred_check
      %p56 = pneg %p55
    $region19: #{tpu_custom_call.1} parent=1 // pred_check_branch
      %58 = sbr.rel (%p56) target = $region21
    $region20: #{tpu_custom_call.1} parent=1 // pred_region
      %59 = vst [vmem:[#allocation2] sm:$0xff] 0.0
      %60 = vst [vmem:[#allocation2 + $0x8] sm:$0xff] 0.0
      %61 = vst [vmem:[#allocation2 + $0x10] sm:$0xff] 0.0
      %62 = vst [vmem:[#allocation2 + $0x18] sm:$0xff] 0.0
      %63 = vst [vmem:[#allocation2 + $0x20] sm:$0xff] 0.0
      %64 = vst [vmem:[#allocation2 + $0x28] sm:$0xff] 0.0
      %65 = vst [vmem:[#allocation2 + $0x30] sm:$0xff] 0.0
      %66 = vst [vmem:[#allocation2 + $0x38] sm:$0xff] 0.0
      %67 = vst [vmem:[#allocation3] sm:$0xff] 0.0
      %68 = vst [vmem:[#allocation3 + $0x8] sm:$0xff] 0.0
      %69 = vst [vmem:[#allocation3 + $0x10] sm:$0xff] 0.0
      %70 = vst [vmem:[#allocation3 + $0x18] sm:$0xff] 0.0
      %71 = vst [vmem:[#allocation3 + $0x20] sm:$0xff] 0.0
      %72 = vst [vmem:[#allocation3 + $0x28] sm:$0xff] 0.0
      %73 = vst [vmem:[#allocation3 + $0x30] sm:$0xff] 0.0
      %74 = vst [vmem:[#allocation3 + $0x38] sm:$0xff] 0.0
    $region21: #{tpu_custom_call.1} parent=1 // pred_fallthru
      _
    %v75 = vld [vmem:[#allocation4] sm:$0xff]
    %v76 = vld [vmem:[#allocation4 + $0x8] sm:$0xff]
    %v77 = vld [vmem:[#allocation4 + $0x10] sm:$0xff]
    %v78 = vld [vmem:[#allocation4 + $0x18] sm:$0xff]
    %v79 = vld [vmem:[#allocation4 + $0x20] sm:$0xff]
    %v80 = vld [vmem:[#allocation4 + $0x28] sm:$0xff]
    %v81 = vld [vmem:[#allocation4 + $0x30] sm:$0xff]
    %v82 = vld [vmem:[#allocation4 + $0x38] sm:$0xff]
    %v83 = vld [vmem:[#allocation7] sm:$0xff]
    %v84 = vld [vmem:[#allocation7 + $0x8] sm:$0xff]
    %v85 = vld [vmem:[#allocation7 + $0x10] sm:$0xff]
    %v86 = vld [vmem:[#allocation7 + $0x18] sm:$0xff]
    %v87 = vld [vmem:[#allocation7 + $0x20] sm:$0xff]
    %v88 = vld [vmem:[#allocation7 + $0x28] sm:$0xff]
    %v89 = vld [vmem:[#allocation7 + $0x30] sm:$0xff]
    %v90 = vld [vmem:[#allocation7 + $0x38] sm:$0xff]
    %v91 = vmul.f32 %v75, 0.5
    %v92 = vmul.f32 %v76, 0.5
    %v93 = vmul.f32 %v77, 0.5
    %v94 = vmul.f32 %v78, 0.5
    %v95 = vmul.f32 %v79, 0.5
    %v96 = vmul.f32 %v80, 0.5
    %v97 = vmul.f32 %v81, 0.5
    %v98 = vmul.f32 %v82, 0.5
    %v99 = vtanh.pop %v91
    %v100 = vtanh.pop %v92
    %v101 = vtanh.pop %v93
    %v102 = vtanh.pop %v94
    %v103 = vtanh.pop %v95
    %v104 = vtanh.pop %v96
    %v105 = vtanh.pop %v97
    %v106 = vtanh.pop %v98
    %v107 = vmul.f32 %v99, 0.5
    %v108 = vmul.f32 %v100, 0.5
    %v109 = vmul.f32 %v101, 0.5
    %v110 = vmul.f32 %v102, 0.5
    %v111 = vmul.f32 %v103, 0.5
    %v112 = vmul.f32 %v104, 0.5
    %v113 = vmul.f32 %v105, 0.5
    %v114 = vmul.f32 %v106, 0.5
    %v115 = vadd.f32 %v107, 0.5
    %v116 = vadd.f32 %v108, 0.5
    %v117 = vadd.f32 %v109, 0.5
    %v118 = vadd.f32 %v110, 0.5
    %v119 = vadd.f32 %v111, 0.5
    %v120 = vadd.f32 %v112, 0.5
    %v121 = vadd.f32 %v113, 0.5
    %v122 = vadd.f32 %v114, 0.5
    %v123 = vmul.f32 %v115, %v83
    %v124 = vmul.f32 %v116, %v84
    %v125 = vmul.f32 %v117, %v85
    %v126 = vmul.f32 %v118, %v86
    %v127 = vmul.f32 %v119, %v87
    %v128 = vmul.f32 %v120, %v88
    %v129 = vmul.f32 %v121, %v89
    %v130 = vmul.f32 %v122, %v90
    %v131 = vmul.f32 %v115, %v115
    %v132 = vmul.f32 %v116, %v116
    %v133 = vmul.f32 %v117, %v117
    %v134 = vmul.f32 %v118, %v118
    %v135 = vmul.f32 %v119, %v119
    %v136 = vmul.f32 %v120, %v120
    %v137 = vmul.f32 %v121, %v121
    %v138 = vmul.f32 %v122, %v122
    %v139 = vmul.f32 %v83, %v83
    %v140 = vmul.f32 %v84, %v84
    %v141 = vmul.f32 %v85, %v85
    %v142 = vmul.f32 %v86, %v86
    %v143 = vmul.f32 %v87, %v87
    %v144 = vmul.f32 %v88, %v88
    %v145 = vmul.f32 %v89, %v89
    %v146 = vmul.f32 %v90, %v90
    %v147 = vadd.f32 %v131, %v139
    %v148 = vadd.f32 %v132, %v140
    %v149 = vadd.f32 %v133, %v141
    %v150 = vadd.f32 %v134, %v142
    %v151 = vadd.f32 %v135, %v143
    %v152 = vadd.f32 %v136, %v144
    %v153 = vadd.f32 %v137, %v145
    %v154 = vadd.f32 %v138, %v146
    %v155 = vld [vmem:[#allocation2] sm:$0xff]
    %v156 = vld [vmem:[#allocation2 + $0x8] sm:$0xff]
    %v157 = vld [vmem:[#allocation2 + $0x10] sm:$0xff]
    %v158 = vld [vmem:[#allocation2 + $0x18] sm:$0xff]
    %v159 = vld [vmem:[#allocation2 + $0x20] sm:$0xff]
    %v160 = vld [vmem:[#allocation2 + $0x28] sm:$0xff]
    %v161 = vld [vmem:[#allocation2 + $0x30] sm:$0xff]
    %v162 = vld [vmem:[#allocation2 + $0x38] sm:$0xff]
    %v163 = vadd.f32 %v155, %v123
    %v164 = vadd.f32 %v156, %v124
    %v165 = vadd.f32 %v157, %v125
    %v166 = vadd.f32 %v158, %v126
    %v167 = vadd.f32 %v159, %v127
    %v168 = vadd.f32 %v160, %v128
    %v169 = vadd.f32 %v161, %v129
    %v170 = vadd.f32 %v162, %v130
    %171 = vst [vmem:[#allocation2] sm:$0xff] %v163
    %172 = vst [vmem:[#allocation2 + $0x8] sm:$0xff] %v164
    %173 = vst [vmem:[#allocation2 + $0x10] sm:$0xff] %v165
    %174 = vst [vmem:[#allocation2 + $0x18] sm:$0xff] %v166
    %175 = vst [vmem:[#allocation2 + $0x20] sm:$0xff] %v167
    %176 = vst [vmem:[#allocation2 + $0x28] sm:$0xff] %v168
    %177 = vst [vmem:[#allocation2 + $0x30] sm:$0xff] %v169
    %178 = vst [vmem:[#allocation2 + $0x38] sm:$0xff] %v170
    %v179 = vld [vmem:[#allocation3] sm:$0xff]
    %v180 = vld [vmem:[#allocation3 + $0x8] sm:$0xff]
    %v181 = vld [vmem:[#allocation3 + $0x10] sm:$0xff]
    %v182 = vld [vmem:[#allocation3 + $0x18] sm:$0xff]
    %v183 = vld [vmem:[#allocation3 + $0x20] sm:$0xff]
    %v184 = vld [vmem:[#allocation3 + $0x28] sm:$0xff]
    %v185 = vld [vmem:[#allocation3 + $0x30] sm:$0xff]
    %v186 = vld [vmem:[#allocation3 + $0x38] sm:$0xff]
    %v187 = vadd.f32 %v179, %v147
    %v188 = vadd.f32 %v180, %v148
    %v189 = vadd.f32 %v181, %v149
    %v190 = vadd.f32 %v182, %v150
    %v191 = vadd.f32 %v183, %v151
    %v192 = vadd.f32 %v184, %v152
    %v193 = vadd.f32 %v185, %v153
    %v194 = vadd.f32 %v186, %v154
    %195 = vst [vmem:[#allocation3] sm:$0xff] %v187
    %196 = vst [vmem:[#allocation3 + $0x8] sm:$0xff] %v188
    %197 = vst [vmem:[#allocation3 + $0x10] sm:$0xff] %v189
    %198 = vst [vmem:[#allocation3 + $0x18] sm:$0xff] %v190
    %199 = vst [vmem:[#allocation3 + $0x20] sm:$0xff] %v191
    %200 = vst [vmem:[#allocation3 + $0x28] sm:$0xff] %v192
    %201 = vst [vmem:[#allocation3 + $0x30] sm:$0xff] %v193
    %202 = vst [vmem:[#allocation3 + $0x38] sm:$0xff] %v194
    // Predicated region
    $region22: #{tpu_custom_call.1} parent=1 // pred_check
      %p203 = pneg %p55
    $region23: #{tpu_custom_call.1} parent=1 // pred_check_branch
      %205 = sbr.rel (%p203) target = $region25
    $region24: #{tpu_custom_call.1} parent=1 // pred_region
      %v206 = vld [vmem:[#allocation2] sm:$0xff]
      %v207 = vld [vmem:[#allocation2 + $0x8] sm:$0xff]
      %v208 = vld [vmem:[#allocation2 + $0x10] sm:$0xff]
      %v209 = vld [vmem:[#allocation2 + $0x18] sm:$0xff]
      %v210 = vld [vmem:[#allocation2 + $0x20] sm:$0xff]
      %v211 = vld [vmem:[#allocation2 + $0x28] sm:$0xff]
      %v212 = vld [vmem:[#allocation2 + $0x30] sm:$0xff]
      %v213 = vld [vmem:[#allocation2 + $0x38] sm:$0xff]
      %v214 = vrot.slane %v206, 4
      %v215 = vadd.f32 %v206, %v214
      %v216 = vrot.slane %v215, 2
      %v217 = vadd.f32 %v215, %v216
      %v218 = vrot.slane %v217, 1
      %v219 = vadd.f32 %v217, %v218
      %v220 = vrot.slane %v207, 4
      %v221 = vadd.f32 %v207, %v220
      %v222 = vrot.slane %v221, 2
      %v223 = vadd.f32 %v221, %v222
      %v224 = vrot.slane %v223, 1
      %v225 = vadd.f32 %v223, %v224
      %v226 = vrot.slane %v208, 4
      %v227 = vadd.f32 %v208, %v226
      %v228 = vrot.slane %v227, 2
      %v229 = vadd.f32 %v227, %v228
      %v230 = vrot.slane %v229, 1
      %v231 = vadd.f32 %v229, %v230
      %v232 = vrot.slane %v209, 4
      %v233 = vadd.f32 %v209, %v232
      %v234 = vrot.slane %v233, 2
      %v235 = vadd.f32 %v233, %v234
      %v236 = vrot.slane %v235, 1
      %v237 = vadd.f32 %v235, %v236
      %v238 = vrot.slane %v210, 4
      %v239 = vadd.f32 %v210, %v238
      %v240 = vrot.slane %v239, 2
      %v241 = vadd.f32 %v239, %v240
      %v242 = vrot.slane %v241, 1
      %v243 = vadd.f32 %v241, %v242
      %v244 = vrot.slane %v211, 4
      %v245 = vadd.f32 %v211, %v244
      %v246 = vrot.slane %v245, 2
      %v247 = vadd.f32 %v245, %v246
      %v248 = vrot.slane %v247, 1
      %v249 = vadd.f32 %v247, %v248
      %v250 = vrot.slane %v212, 4
      %v251 = vadd.f32 %v212, %v250
      %v252 = vrot.slane %v251, 2
      %v253 = vadd.f32 %v251, %v252
      %v254 = vrot.slane %v253, 1
      %v255 = vadd.f32 %v253, %v254
      %v256 = vrot.slane %v213, 4
      %v257 = vadd.f32 %v213, %v256
      %v258 = vrot.slane %v257, 2
      %v259 = vadd.f32 %v257, %v258
      %v260 = vrot.slane %v259, 1
      %v261 = vadd.f32 %v259, %v260
      %vm270 = vcmask 1041409
      %v271 = vsel %vm270, %v225, %v219
      %vm272 = vcmask 1042434
      %v273 = vsel %vm272, %v231, %v271
      %vm274 = vcmask 1043459
      %v275 = vsel %vm274, %v237, %v273
      %vm276 = vcmask 1044484
      %v277 = vsel %vm276, %v243, %v275
      %vm278 = vcmask 1045509
      %v279 = vsel %vm278, %v249, %v277
      %vm280 = vcmask 1046534
      %v281 = vsel %vm280, %v255, %v279
      %vm282 = vcmask 1047559
      %v283 = vsel %vm282, %v261, %v281
      %285 = vst [vmem:[#allocation9] sm:$0xff] %v283
      %v286 = vld [vmem:[#allocation3] sm:$0xff]
      %v287 = vld [vmem:[#allocation3 + $0x8] sm:$0xff]
      %v288 = vld [vmem:[#allocation3 + $0x10] sm:$0xff]
      %v289 = vld [vmem:[#allocation3 + $0x18] sm:$0xff]
      %v290 = vld [vmem:[#allocation3 + $0x20] sm:$0xff]
      %v291 = vld [vmem:[#allocation3 + $0x28] sm:$0xff]
      %v292 = vld [vmem:[#allocation3 + $0x30] sm:$0xff]
      %v293 = vld [vmem:[#allocation3 + $0x38] sm:$0xff]
      %v294 = vrot.slane %v286, 4
      %v295 = vadd.f32 %v286, %v294
      %v296 = vrot.slane %v295, 2
      %v297 = vadd.f32 %v295, %v296
      %v298 = vrot.slane %v297, 1
      %v299 = vadd.f32 %v297, %v298
      %v300 = vrot.slane %v287, 4
      %v301 = vadd.f32 %v287, %v300
      %v302 = vrot.slane %v301, 2
      %v303 = vadd.f32 %v301, %v302
      %v304 = vrot.slane %v303, 1
      %v305 = vadd.f32 %v303, %v304
      %v306 = vrot.slane %v288, 4
      %v307 = vadd.f32 %v288, %v306
      %v308 = vrot.slane %v307, 2
      %v309 = vadd.f32 %v307, %v308
      %v310 = vrot.slane %v309, 1
      %v311 = vadd.f32 %v309, %v310
      %v312 = vrot.slane %v289, 4
      %v313 = vadd.f32 %v289, %v312
      %v314 = vrot.slane %v313, 2
      %v315 = vadd.f32 %v313, %v314
      %v316 = vrot.slane %v315, 1
      %v317 = vadd.f32 %v315, %v316
      %v318 = vrot.slane %v290, 4
      %v319 = vadd.f32 %v290, %v318
      %v320 = vrot.slane %v319, 2
      %v321 = vadd.f32 %v319, %v320
      %v322 = vrot.slane %v321, 1
      %v323 = vadd.f32 %v321, %v322
      %v324 = vrot.slane %v291, 4
      %v325 = vadd.f32 %v291, %v324
      %v326 = vrot.slane %v325, 2
      %v327 = vadd.f32 %v325, %v326
      %v328 = vrot.slane %v327, 1
      %v329 = vadd.f32 %v327, %v328
      %v330 = vrot.slane %v292, 4
      %v331 = vadd.f32 %v292, %v330
      %v332 = vrot.slane %v331, 2
      %v333 = vadd.f32 %v331, %v332
      %v334 = vrot.slane %v333, 1
      %v335 = vadd.f32 %v333, %v334
      %v336 = vrot.slane %v293, 4
      %v337 = vadd.f32 %v293, %v336
      %v338 = vrot.slane %v337, 2
      %v339 = vadd.f32 %v337, %v338
      %v340 = vrot.slane %v339, 1
      %v341 = vadd.f32 %v339, %v340
      %v350 = vsel %vm270, %v305, %v299
      %v351 = vsel %vm272, %v311, %v350
      %v352 = vsel %vm274, %v317, %v351
      %v353 = vsel %vm276, %v323, %v352
      %v354 = vsel %vm278, %v329, %v353
      %v355 = vsel %vm280, %v335, %v354
      %v356 = vsel %vm282, %v341, %v355
      %358 = vst [vmem:[#allocation10] sm:$0xff] %v356
    $region25: #{tpu_custom_call.1} parent=1 // pred_fallthru
      _
    // Predicated region
    $region26: #{tpu_custom_call.1} parent=1 // pred_check
      _
    $region27: #{tpu_custom_call.1} parent=1 // pred_check_branch
      %360 = sbr.rel (0) target = $region29
    $region28: #{tpu_custom_call.1} parent=1 // pred_region
      %362 = vsyncadd [#allocation6], 0
      %s364 = sshll.u32 [#allocation9], 4
      %s365 = int_to_ptr.vmem [resolvable:$true] %s364
      %s366 = sshll.u32 %s2, 4
      %s367 = int_to_ptr.hbm [resolvable:$true] %s366
      %369 = dma.vmem_to_hbm [thread:$0]  %s365, 128, %s367, [#allocation6]
    $region29: #{tpu_custom_call.1} parent=1 // pred_fallthru
      _
    // Predicated region
    $region30: #{tpu_custom_call.1} parent=1 // pred_check
      _
    $region31: #{tpu_custom_call.1} parent=1 // pred_check_branch
      %371 = sbr.rel (0) target = $region33
    $region32: #{tpu_custom_call.1} parent=1 // pred_region
      %373 = vsyncadd [#allocation11], 0
      %s375 = sshll.u32 [#allocation10], 4
      %s376 = int_to_ptr.vmem [resolvable:$true] %s375
      %s377 = sshll.u32 %s3, 4
      %s378 = int_to_ptr.hbm [resolvable:$true] %s377
      %380 = dma.vmem_to_hbm [thread:$0]  %s376, 128, %s378, [#allocation11]
    $region33: #{tpu_custom_call.1} parent=1 // pred_fallthru
      _
    // Predicated region
    $region34: #{tpu_custom_call.1} parent=1 // pred_check
      _
    $region35: #{tpu_custom_call.1} parent=1 // pred_check_branch
      %382 = sbr.rel (0) target = $region37
    $region36: #{tpu_custom_call.1} parent=1 // pred_region
      %384 = dma.done [#allocation6], 128
    $region37: #{tpu_custom_call.1} parent=1 // pred_fallthru
      _
    // Predicated region
    $region38: #{tpu_custom_call.1} parent=1 // pred_check
      _
    $region39: #{tpu_custom_call.1} parent=1 // pred_check_branch
      %386 = sbr.rel (0) target = $region41
    $region40: #{tpu_custom_call.1} parent=1 // pred_region
      %388 = dma.done [#allocation11], 128
    $region41: #{tpu_custom_call.1} parent=1 // pred_fallthru
      _
    %389 = vsyncpa [#allocation5], 1
    %390 = vsyncpa [#allocation8], 1
    %391 = vsyncpa [#allocation6], 1
    %392 = vsyncpa [#allocation11], 1

</llo_original>
